<compile_context>
chip_gen: v5e
topology: v5e:2x2
jax: 0.10.0
libtpu: 0.0.40
codegen_flags: <defaults>
</compile_context>

<pallas_src>
import jax
import jax.numpy as jnp
from jax.experimental import pallas as pl
from jax.experimental.pallas import tpu as pltpu

_LANE = 128
_TARGET_TILE_BYTES = 2 * 1024 * 1024  # ~2 MiB tiles: at/after the HBM-roofline knee.


def _relu_kernel(x_ref, o_ref):
    # Elementwise ReLU on the whole VMEM tile (pure VPU work).
    o_ref[...] = jnp.maximum(x_ref[...], 0)


def _sublane_multiple(dtype) -> int:
    # Native sublane packing: 8 rows for 32-bit, 16 for 16-bit, 32 for 8-bit.
    bits = jnp.dtype(dtype).itemsize * 8
    return max(8, 256 // bits)


def _pick_width(total: int, sub: int) -> int:
    # Lane-dense width: largest multiple of 128 (up to 4096) dividing total,
    # preferring widths that also leave rows a multiple of the sublane pack.
    candidates = (4096, 2048, 1024, 512, 256, 128)
    for w in candidates:
        if total % w == 0 and (total // w) % sub == 0:
            return w
    for w in candidates:
        if total % w == 0:
            return w
    return _LANE


@jax.jit
def pallas_relu(x: jax.Array) -> jax.Array:
    """ReLU over an arbitrary-shape array via a lane-dense 2-D Pallas kernel."""
    orig_shape = x.shape
    dtype = x.dtype
    total = x.size
    sub = _sublane_multiple(dtype)

    if total % _LANE == 0:
        # Fast path (typical NCHW activations): pure reshape, no pad/slice copies.
        w = _pick_width(total, sub)
        flat_len = total
    else:
        # Slow path: dtype-aware pad to a native (sub, 128) tile multiple.
        # Zero padding is benign for ReLU; the tail is sliced off afterwards.
        w = _LANE
        pad_to = sub * _LANE
        flat_len = ((total + pad_to - 1) // pad_to) * pad_to

    flat = x.reshape(-1)
    if flat_len != total:
        flat = jnp.pad(flat, (0, flat_len - total))
    rows = flat_len // w
    x2d = flat.reshape(rows, w)

    elt = jnp.dtype(dtype).itemsize
    block_rows = max(sub, (_TARGET_TILE_BYTES // (w * elt)) // sub * sub)
    if rows <= block_rows:
        # Whole array fits in one tile; a block equal to the full dim is always legal.
        block_rows = rows
    grid = (pl.cdiv(rows, block_rows),)

    out2d = pl.pallas_call(
        _relu_kernel,
        out_shape=jax.ShapeDtypeStruct((rows, w), dtype),
        grid=grid,
        in_specs=[pl.BlockSpec((block_rows, w), lambda i: (i, 0))],
        out_specs=pl.BlockSpec((block_rows, w), lambda i: (i, 0)),
        compiler_params=pltpu.CompilerParams(
            # Lets v7x shard grid steps across its 2 TensorCores; harmless on v5e/v6e.
            dimension_semantics=("parallel",),
        ),
    )(x2d)

    out_flat = out2d.reshape(-1)
    if flat_len != total:
        out_flat = out_flat[:total]
    return out_flat.reshape(orig_shape)


class MyNNPallas:
    """Pallas equivalent of the PyTorch MyNN module (forward = ReLU).
    The PyTorch module also constructs a Sigmoid but never uses it in forward."""

    def __call__(self, x: jax.Array) -> jax.Array:
        return pallas_relu(x)


if __name__ == "__main__":
    key = jax.random.PRNGKey(0)
    # CIFAR10-like NCHW input at small shape: batch=2, channels=4, spatial=16.
    x = jax.random.normal(key, (2, 4, 16, 16), dtype=jnp.float32)

    ref = jnp.maximum(x, 0.0)

    model = MyNNPallas()
    out = model(x)
    out = jax.block_until_ready(out)

    assert out.shape == x.shape and out.dtype == x.dtype
    assert jnp.allclose(out, ref), "mismatch vs reference ReLU"

    print("KERNEL_OK")
</pallas_src>

<mosaic_0001>
module attributes {stable_mosaic.version = 11 : i64} {
  func.func @_relu_kernel(%arg0: i32, %arg1: memref<8x256xf32, #tpu.memory_space<vmem>>, %arg2: memref<8x256xf32, #tpu.memory_space<vmem>>) attributes {dimension_semantics = [#tpu.dimension_semantics<parallel>], iteration_bounds = array<i64: 1>, scalar_prefetch = 0 : i64, scratch_operands = 0 : i64, tpu.core_type = #tpu.core_type<tc>, window_params = [{transform_indices = @transform_0, window_bounds = array<i64: 8, 256>}, {transform_indices = @transform_1, window_bounds = array<i64: 8, 256>}]} {
    %c0 = arith.constant 0 : index
    %c0_0 = arith.constant 0 : index
    %0 = vector.load %arg1[%c0, %c0_0] : memref<8x256xf32, #tpu.memory_space<vmem>>, vector<8x256xf32>
    %cst = arith.constant 0.000000e+00 : f32
    %1 = vector.broadcast %cst : f32 to vector<8x256xf32>
    %2 = arith.maximumf %0, %1 : vector<8x256xf32>
    %c0_1 = arith.constant 0 : index
    %c0_2 = arith.constant 0 : index
    %3 = vector.load %arg2[%c0_1, %c0_2] : memref<8x256xf32, #tpu.memory_space<vmem>>, vector<8x256xf32>
    tpu.vector_store %arg2[%c0_1, %c0_2], %2 {strides = array<i32>} : memref<8x256xf32, #tpu.memory_space<vmem>>, vector<8x256xf32>,
    return
  }
  func.func @transform_0(%arg0: i32) -> (i32, i32) {
    %c0_i32 = arith.constant 0 : i32
    %c0_i32_0 = arith.constant 0 : i32
    return %arg0, %c0_i32 : i32, i32
  }
  func.func @transform_1(%arg0: i32) -> (i32, i32) {
    %c0_i32 = arith.constant 0 : i32
    %c0_i32_0 = arith.constant 0 : i32
    return %arg0, %c0_i32 : i32, i32
  }
}

</mosaic_0001>

<llo_original>
// kernel: pallas_relu.1
$region0: #{pallas_relu.1}
  #allocation0 [shape = 'u32[]', space=smem, size = 0x4, offset = 0x4, fixed_abs, tag = 'smem constant byte address 0x4 - core index']
  #allocation1 [shape = 'u32[72,128]{1,0:T(1,128)}', space=vmem, size = 0x9000, scoped, tag = 'internal scratch']
  %s0 = inlined_call_operand.vmem [shape: f32[8,256], index: 0, kind: input, shape index: {}]
  %s1 = inlined_call_operand.vmem [shape: f32[8,256], index: 1, kind: output, shape index: {}]
  %s2 = sld [smem:[#allocation0]]
  $region14: #{pallas_relu.1} parent=0
    _
  %s4 = ssub.s32 1, %s2
  %s5 = scalar_select 0, %s4, %s2
  // Predicated region
  $region2: #{pallas_relu.1} parent=0 // pred_check
    _
  $region3: #{pallas_relu.1} parent=0 // pred_check_branch
    %7 = sbr.rel (0) target = $region5
  $region4: #{pallas_relu.1} parent=0 // pred_region
    _
  $region5: #{pallas_relu.1} parent=0 // pred_fallthru
    _
  %v8 = vld [vmem:[%s0] sm:$0xff]
  %v9 = vld [vmem:[%s0 + $0x8] sm:$0xff]
  %v10 = vmax.f32 %v8, 0.0
  %v11 = vmax.f32 %v9, 0.0
  %12 = vst [vmem:[%s1] sm:$0xff] %v10
  %13 = vst [vmem:[%s1 + $0x8] sm:$0xff] %v11
  // Predicated region
  $region6: #{pallas_relu.1} parent=0 // pred_check
    _
  $region7: #{pallas_relu.1} parent=0 // pred_check_branch
    %15 = sbr.rel (0) target = $region9
  $region8: #{pallas_relu.1} parent=0 // pred_region
    _
  $region9: #{pallas_relu.1} parent=0 // pred_fallthru
    _
  // Predicated region
  $region10: #{pallas_relu.1} parent=0 // pred_check
    _
  $region11: #{pallas_relu.1} parent=0 // pred_check_branch
    %17 = sbr.rel (0) target = $region13
  $region12: #{pallas_relu.1} parent=0 // pred_region
    _
  $region13: #{pallas_relu.1} parent=0 // pred_fallthru
    _

</llo_original>
